<compile_context>
chip_gen: v7x
topology: tpu7x:2x2x1
jax: 0.10.0
libtpu: 0.0.40
codegen_flags: <defaults>
</compile_context>

<pallas_src>
import jax
import jax.numpy as jnp
from jax.experimental import pallas as pl
from jax.experimental.pallas import tpu as pltpu

IN_FEATURES = 8
OUT_FEATURES = 1
DIMS = [IN_FEATURES, 16, 32, 16, 8, 4, OUT_FEATURES]
N_LAYERS = len(DIMS) - 1          # 6 linear layers
N_HIDDEN = N_LAYERS - 1           # 5 Linear+BN+ReLU blocks
P = 32                            # padded feature width (max of DIMS[1:])
EPS = 1e-5                        # BatchNorm1d default eps


def _round_up(v, m):
    return ((v + m - 1) // m) * m


# ----------------------------------------------------------------------------- kernel
def _mlp_kernel(x_ref, w0_ref, w_ref, b_ref, out_ref):
    """One batch tile of the BN-folded MLP (activations are [features, batch_tile]).

    x_ref   : [IN_FEATURES, T]     bf16   input tile, batch on the 128-lane axis
    w0_ref  : [P, IN_FEATURES]     bf16   folded layer-0 weight (rows >= 16 are zero)
    w_ref   : [N_LAYERS-1, P, P]   bf16   folded layer-1..5 weights, zero padded
    b_ref   : [N_LAYERS, P, 1]     f32    folded biases, zero padded
    out_ref : [OUT_FEATURES, T]    f32
    """
    # Layer 0:  [P, IN] @ [IN, T] -> [P, T]   (f32 accumulation on the MXU)
    y = jnp.dot(w0_ref[...], x_ref[...], preferred_element_type=jnp.float32) + b_ref[0]
    h = jnp.maximum(y, 0.0).astype(jnp.bfloat16)

    # Layers 1 .. N_LAYERS-2: uniform zero-padded [P, P] weights.  Padding rows/cols are
    # zero, so padded activation rows remain exactly zero through bias + ReLU.
    for i in range(1, N_LAYERS - 1):
        y = jnp.dot(w_ref[i - 1], h, preferred_element_type=jnp.float32) + b_ref[i]
        h = jnp.maximum(y, 0.0).astype(jnp.bfloat16)

    # Final Linear (no BN / ReLU); only the first OUT_FEATURES rows are meaningful.
    y = (jnp.dot(w_ref[N_LAYERS - 2], h, preferred_element_type=jnp.float32)
         + b_ref[N_LAYERS - 1])
    out_ref[...] = y[:OUT_FEATURES, :].astype(out_ref.dtype)


# ----------------------------------------------------------------------------- wrapper
def diabetes_forward(x, w0, w_rest, b_all, *, tile_n=2048):
    """Eval-mode forward. x: [N, IN_FEATURES] float. Returns [N] (like .squeeze(dim=1))."""
    n = x.shape[0]
    tile_n = min(tile_n, _round_up(max(n, 1), 128))
    assert tile_n % 128 == 0
    n_pad = _round_up(n, tile_n)
    num_tiles = n_pad // tile_n

    # Transposed, zero-padded, bf16 input: batch on the 128-lane axis (halves HBM read BW).
    xt = jnp.zeros((IN_FEATURES, n_pad), jnp.bfloat16)
    xt = xt.at[:, :n].set(x.astype(jnp.bfloat16).T)

    # Per-sample MACs: 8*16 + 16*32 + 32*16 + 16*8 + 8*4 + 4*1 = 1316.
    flops = 2 * 1316 * n_pad
    bytes_accessed = (xt.size * 2 + w0.size * 2 + w_rest.size * 2
                      + b_all.size * 4 + OUT_FEATURES * n_pad * 4)

    out = pl.pallas_call(
        _mlp_kernel,
        out_shape=jax.ShapeDtypeStruct((OUT_FEATURES, n_pad), jnp.float32),
        grid=(num_tiles,),
        in_specs=[
            pl.BlockSpec((IN_FEATURES, tile_n), lambda i: (0, i)),       # x: tiled on batch
            pl.BlockSpec((P, IN_FEATURES), lambda i: (0, 0)),            # w0: resident
            pl.BlockSpec((N_LAYERS - 1, P, P), lambda i: (0, 0, 0)),     # w1..5: resident
            pl.BlockSpec((N_LAYERS, P, 1), lambda i: (0, 0, 0)),         # biases: resident
        ],
        out_specs=pl.BlockSpec((OUT_FEATURES, tile_n), lambda i: (0, i)),
        compiler_params=pltpu.CompilerParams(dimension_semantics=("parallel",)),
        cost_estimate=pl.CostEstimate(flops=flops, transcendentals=0,
                                      bytes_accessed=bytes_accessed),
    )(xt, w0, w_rest, b_all)

    y = out[:, :n].T                                   # [N, OUT_FEATURES]
    return jnp.squeeze(y, axis=1) if OUT_FEATURES == 1 else y


# ----------------------------------------------------------------------------- params
def init_params(key):
    """PyTorch-layout params: 5x (W[out,in], b, gamma, beta, mean, var) + final (W, b)."""
    params = []
    keys = jax.random.split(key, 2 * N_LAYERS)
    k = 0
    for i in range(N_HIDDEN):
        fan_in, fan_out = DIMS[i], DIMS[i + 1]
        bound = 1.0 / (fan_in ** 0.5)
        w = jax.random.uniform(keys[k], (fan_out, fan_in), jnp.float32, -bound, bound); k += 1
        b = jax.random.uniform(keys[k], (fan_out,), jnp.float32, -bound, bound); k += 1
        gamma = 1.0 + 0.01 * jnp.arange(fan_out, dtype=jnp.float32)
        beta = 0.01 * jnp.arange(fan_out, dtype=jnp.float32)
        mean = 0.05 * jnp.ones((fan_out,), jnp.float32)
        var = 1.0 + 0.02 * jnp.arange(fan_out, dtype=jnp.float32)
        params.append((w, b, gamma, beta, mean, var))
    fan_in, fan_out = DIMS[-2], DIMS[-1]
    bound = 1.0 / (fan_in ** 0.5)
    w = jax.random.uniform(keys[k], (fan_out, fan_in), jnp.float32, -bound, bound); k += 1
    b = jax.random.uniform(keys[k], (fan_out,), jnp.float32, -bound, bound); k += 1
    params.append((w, b))
    return params


def fold_batchnorm(params):
    """Fold eval-mode BatchNorm1d into the preceding Linear. Returns [(W', b')] * 6."""
    folded = []
    for (w, b, gamma, beta, mean, var) in params[:-1]:
        scale = gamma * jax.lax.rsqrt(var + EPS)                 # [out]
        folded.append((w * scale[:, None], (b - mean) * scale + beta))
    folded.append(params[-1])
    return folded


def pack_params(folded):
    """Pack folded layers into padded slabs: w0 [P,IN] bf16, w_rest [5,P,P] bf16, b [6,P,1] f32."""
    w0 = jnp.zeros((P, IN_FEATURES), jnp.float32)
    w0 = w0.at[:DIMS[1], :DIMS[0]].set(folded[0][0])
    w_rest = jnp.zeros((N_LAYERS - 1, P, P), jnp.float32)
    b_all = jnp.zeros((N_LAYERS, P, 1), jnp.float32)
    b_all = b_all.at[0, :DIMS[1], 0].set(folded[0][1])
    for i in range(1, N_LAYERS):
        w, b = folded[i]
        w_rest = w_rest.at[i - 1, :DIMS[i + 1], :DIMS[i]].set(w)
        b_all = b_all.at[i, :DIMS[i + 1], 0].set(b)
    return w0.astype(jnp.bfloat16), w_rest.astype(jnp.bfloat16), b_all


# --------------------------------------------------------------------------- references
def reference_forward_f32(x, params):
    """Pure-JAX float32 eval-mode reference matching the PyTorch module."""
    h = x.astype(jnp.float32)
    for (w, b, gamma, beta, mean, var) in params[:-1]:
        y = h @ w.T + b
        y = (y - mean) * (gamma * jax.lax.rsqrt(var + EPS)) + beta
        h = jnp.maximum(y, 0.0)
    w, b = params[-1]
    out = h @ w.T + b
    return jnp.squeeze(out, axis=1) if OUT_FEATURES == 1 else out


def reference_forward_bf16(x, folded):
    """Pure-JAX reference mirroring the kernel math (bf16 matmul inputs, f32 accumulation)."""
    h = x.astype(jnp.float32)
    for i, (w, b) in enumerate(folded):
        y = jnp.dot(h.astype(jnp.bfloat16), w.T.astype(jnp.bfloat16),
                    preferred_element_type=jnp.float32) + b
        h = jnp.maximum(y, 0.0) if i < len(folded) - 1 else y
    return jnp.squeeze(h, axis=1) if OUT_FEATURES == 1 else h


# ----------------------------------------------------------------------------- main
if __name__ == "__main__":
    key = jax.random.PRNGKey(0)
    k_params, k_x = jax.random.split(key)

    params = init_params(k_params)
    folded = fold_batchnorm(params)
    w0, w_rest, b_all = pack_params(folded)

    batch = 200
    x = jax.random.normal(k_x, (batch, IN_FEATURES), dtype=jnp.float32)

    # tile_n=128 only to exercise a multi-step grid at this small demo batch;
    # the default (2048) is the intended production tile size.
    y = diabetes_forward(x, w0, w_rest, b_all, tile_n=128)
    y = jax.block_until_ready(y)

    y_ref = reference_forward_bf16(x, folded)     # same math as the kernel
    y_f32 = reference_forward_f32(x, params)      # exact eval-mode module semantics (f32)

    assert y.shape == (batch,), y.shape
    assert jnp.allclose(y, y_ref, atol=2e-3, rtol=2e-3), float(jnp.max(jnp.abs(y - y_ref)))
    assert jnp.allclose(y, y_f32, atol=5e-2, rtol=5e-2), float(jnp.max(jnp.abs(y - y_f32)))

    print("KERNEL_OK")
</pallas_src>

<mosaic_0001>
module attributes {stable_mosaic.version = 11 : i64} {
  func.func @_mlp_kernel(%arg0: i32, %arg1: memref<8x128xbf16, #tpu.memory_space<vmem>>, %arg2: memref<32x8xbf16, #tpu.memory_space<vmem>>, %arg3: memref<5x32x32xbf16, #tpu.memory_space<vmem>>, %arg4: memref<6x32x1xf32, #tpu.memory_space<vmem>>, %arg5: memref<1x128xf32, #tpu.memory_space<vmem>>) attributes {dimension_semantics = [#tpu.dimension_semantics<parallel>], iteration_bounds = array<i64: 2>, scalar_prefetch = 0 : i64, scratch_operands = 0 : i64, tpu.core_type = #tpu.core_type<tc>, window_params = [{transform_indices = @transform_0, window_bounds = array<i64: 8, 128>}, {pipeline_mode = #tpu.pipeline_mode<synchronous>, transform_indices = @transform_1, window_bounds = array<i64: 32, 8>}, {pipeline_mode = #tpu.pipeline_mode<synchronous>, transform_indices = @transform_2, window_bounds = array<i64: 5, 32, 32>}, {pipeline_mode = #tpu.pipeline_mode<synchronous>, transform_indices = @transform_3, window_bounds = array<i64: 6, 32, 1>}, {transform_indices = @transform_4, window_bounds = array<i64: 1, 128>}]} {
    %c0 = arith.constant 0 : index
    %c0_0 = arith.constant 0 : index
    %0 = vector.load %arg2[%c0, %c0_0] : memref<32x8xbf16, #tpu.memory_space<vmem>>, vector<32x8xbf16>
    %c0_1 = arith.constant 0 : index
    %c0_2 = arith.constant 0 : index
    %1 = vector.load %arg1[%c0_1, %c0_2] : memref<8x128xbf16, #tpu.memory_space<vmem>>, vector<8x128xbf16>
    %cst = arith.constant dense<0.000000e+00> : vector<32x128xf32>
    %2 = tpu.matmul %0, %1, %cst {dimension_numbers = #tpu.dot_dimension_numbers<[1], [0], [0], [1], [0, 0, 1, 1], [], []>} : vector<32x8xbf16>, vector<8x128xbf16>, vector<32x128xf32> -> vector<32x128xf32>
    %c0_3 = arith.constant 0 : index
    %c0_4 = arith.constant 0 : index
    %c0_5 = arith.constant 0 : index
    %3 = vector.load %arg4[%c0_3, %c0_4, %c0_5] : memref<6x32x1xf32, #tpu.memory_space<vmem>>, vector<1x32x1xf32>
    %4 = vector.shape_cast %3 : vector<1x32x1xf32> to vector<32x1xf32>
    %5 = vector.broadcast %4 : vector<32x1xf32> to vector<32x128xf32>
    %6 = arith.addf %2, %5 : vector<32x128xf32>
    %cst_6 = arith.constant 0.000000e+00 : f32
    %7 = vector.broadcast %cst_6 : f32 to vector<32x128xf32>
    %8 = arith.maximumf %6, %7 : vector<32x128xf32>
    %9 = arith.truncf %8 : vector<32x128xf32> to vector<32x128xbf16>
    %c0_7 = arith.constant 0 : index
    %c0_8 = arith.constant 0 : index
    %c0_9 = arith.constant 0 : index
    %10 = vector.load %arg3[%c0_7, %c0_8, %c0_9] : memref<5x32x32xbf16, #tpu.memory_space<vmem>>, vector<1x32x32xbf16>
    %11 = vector.shape_cast %10 : vector<1x32x32xbf16> to vector<32x32xbf16>
    %cst_10 = arith.constant dense<0.000000e+00> : vector<32x128xf32>
    %12 = tpu.matmul %11, %9, %cst_10 {dimension_numbers = #tpu.dot_dimension_numbers<[1], [0], [0], [1], [0, 0, 1, 1], [], []>} : vector<32x32xbf16>, vector<32x128xbf16>, vector<32x128xf32> -> vector<32x128xf32>
    %c1 = arith.constant 1 : index
    %c0_11 = arith.constant 0 : index
    %c0_12 = arith.constant 0 : index
    %13 = vector.load %arg4[%c1, %c0_11, %c0_12] : memref<6x32x1xf32, #tpu.memory_space<vmem>>, vector<1x32x1xf32>
    %14 = vector.shape_cast %13 : vector<1x32x1xf32> to vector<32x1xf32>
    %15 = vector.broadcast %14 : vector<32x1xf32> to vector<32x128xf32>
    %16 = arith.addf %12, %15 : vector<32x128xf32>
    %cst_13 = arith.constant 0.000000e+00 : f32
    %17 = vector.broadcast %cst_13 : f32 to vector<32x128xf32>
    %18 = arith.maximumf %16, %17 : vector<32x128xf32>
    %19 = arith.truncf %18 : vector<32x128xf32> to vector<32x128xbf16>
    %c1_14 = arith.constant 1 : index
    %c0_15 = arith.constant 0 : index
    %c0_16 = arith.constant 0 : index
    %20 = vector.load %arg3[%c1_14, %c0_15, %c0_16] : memref<5x32x32xbf16, #tpu.memory_space<vmem>>, vector<1x32x32xbf16>
    %21 = vector.shape_cast %20 : vector<1x32x32xbf16> to vector<32x32xbf16>
    %cst_17 = arith.constant dense<0.000000e+00> : vector<32x128xf32>
    %22 = tpu.matmul %21, %19, %cst_17 {dimension_numbers = #tpu.dot_dimension_numbers<[1], [0], [0], [1], [0, 0, 1, 1], [], []>} : vector<32x32xbf16>, vector<32x128xbf16>, vector<32x128xf32> -> vector<32x128xf32>
    %c2 = arith.constant 2 : index
    %c0_18 = arith.constant 0 : index
    %c0_19 = arith.constant 0 : index
    %23 = vector.load %arg4[%c2, %c0_18, %c0_19] : memref<6x32x1xf32, #tpu.memory_space<vmem>>, vector<1x32x1xf32>
    %24 = vector.shape_cast %23 : vector<1x32x1xf32> to vector<32x1xf32>
    %25 = vector.broadcast %24 : vector<32x1xf32> to vector<32x128xf32>
    %26 = arith.addf %22, %25 : vector<32x128xf32>
    %cst_20 = arith.constant 0.000000e+00 : f32
    %27 = vector.broadcast %cst_20 : f32 to vector<32x128xf32>
    %28 = arith.maximumf %26, %27 : vector<32x128xf32>
    %29 = arith.truncf %28 : vector<32x128xf32> to vector<32x128xbf16>
    %c2_21 = arith.constant 2 : index
    %c0_22 = arith.constant 0 : index
    %c0_23 = arith.constant 0 : index
    %30 = vector.load %arg3[%c2_21, %c0_22, %c0_23] : memref<5x32x32xbf16, #tpu.memory_space<vmem>>, vector<1x32x32xbf16>
    %31 = vector.shape_cast %30 : vector<1x32x32xbf16> to vector<32x32xbf16>
    %cst_24 = arith.constant dense<0.000000e+00> : vector<32x128xf32>
    %32 = tpu.matmul %31, %29, %cst_24 {dimension_numbers = #tpu.dot_dimension_numbers<[1], [0], [0], [1], [0, 0, 1, 1], [], []>} : vector<32x32xbf16>, vector<32x128xbf16>, vector<32x128xf32> -> vector<32x128xf32>
    %c3 = arith.constant 3 : index
    %c0_25 = arith.constant 0 : index
    %c0_26 = arith.constant 0 : index
    %33 = vector.load %arg4[%c3, %c0_25, %c0_26] : memref<6x32x1xf32, #tpu.memory_space<vmem>>, vector<1x32x1xf32>
    %34 = vector.shape_cast %33 : vector<1x32x1xf32> to vector<32x1xf32>
    %35 = vector.broadcast %34 : vector<32x1xf32> to vector<32x128xf32>
    %36 = arith.addf %32, %35 : vector<32x128xf32>
    %cst_27 = arith.constant 0.000000e+00 : f32
    %37 = vector.broadcast %cst_27 : f32 to vector<32x128xf32>
    %38 = arith.maximumf %36, %37 : vector<32x128xf32>
    %39 = arith.truncf %38 : vector<32x128xf32> to vector<32x128xbf16>
    %c3_28 = arith.constant 3 : index
    %c0_29 = arith.constant 0 : index
    %c0_30 = arith.constant 0 : index
    %40 = vector.load %arg3[%c3_28, %c0_29, %c0_30] : memref<5x32x32xbf16, #tpu.memory_space<vmem>>, vector<1x32x32xbf16>
    %41 = vector.shape_cast %40 : vector<1x32x32xbf16> to vector<32x32xbf16>
    %cst_31 = arith.constant dense<0.000000e+00> : vector<32x128xf32>
    %42 = tpu.matmul %41, %39, %cst_31 {dimension_numbers = #tpu.dot_dimension_numbers<[1], [0], [0], [1], [0, 0, 1, 1], [], []>} : vector<32x32xbf16>, vector<32x128xbf16>, vector<32x128xf32> -> vector<32x128xf32>
    %c4 = arith.constant 4 : index
    %c0_32 = arith.constant 0 : index
    %c0_33 = arith.constant 0 : index
    %43 = vector.load %arg4[%c4, %c0_32, %c0_33] : memref<6x32x1xf32, #tpu.memory_space<vmem>>, vector<1x32x1xf32>
    %44 = vector.shape_cast %43 : vector<1x32x1xf32> to vector<32x1xf32>
    %45 = vector.broadcast %44 : vector<32x1xf32> to vector<32x128xf32>
    %46 = arith.addf %42, %45 : vector<32x128xf32>
    %cst_34 = arith.constant 0.000000e+00 : f32
    %47 = vector.broadcast %cst_34 : f32 to vector<32x128xf32>
    %48 = arith.maximumf %46, %47 : vector<32x128xf32>
    %49 = arith.truncf %48 : vector<32x128xf32> to vector<32x128xbf16>
    %c4_35 = arith.constant 4 : index
    %c0_36 = arith.constant 0 : index
    %c0_37 = arith.constant 0 : index
    %50 = vector.load %arg3[%c4_35, %c0_36, %c0_37] : memref<5x32x32xbf16, #tpu.memory_space<vmem>>, vector<1x32x32xbf16>
    %51 = vector.shape_cast %50 : vector<1x32x32xbf16> to vector<32x32xbf16>
    %cst_38 = arith.constant dense<0.000000e+00> : vector<32x128xf32>
    %52 = tpu.matmul %51, %49, %cst_38 {dimension_numbers = #tpu.dot_dimension_numbers<[1], [0], [0], [1], [0, 0, 1, 1], [], []>} : vector<32x32xbf16>, vector<32x128xbf16>, vector<32x128xf32> -> vector<32x128xf32>
    %c5 = arith.constant 5 : index
    %c0_39 = arith.constant 0 : index
    %c0_40 = arith.constant 0 : index
    %53 = vector.load %arg4[%c5, %c0_39, %c0_40] : memref<6x32x1xf32, #tpu.memory_space<vmem>>, vector<1x32x1xf32>
    %54 = vector.shape_cast %53 : vector<1x32x1xf32> to vector<32x1xf32>
    %55 = vector.broadcast %54 : vector<32x1xf32> to vector<32x128xf32>
    %56 = arith.addf %52, %55 : vector<32x128xf32>
    %57 = vector.extract_strided_slice %56 {offsets = [0, 0], sizes = [1, 128], strides = [1, 1]} : vector<32x128xf32> to vector<1x128xf32>
    %c0_41 = arith.constant 0 : index
    %c0_42 = arith.constant 0 : index
    %58 = vector.load %arg5[%c0_41, %c0_42] : memref<1x128xf32, #tpu.memory_space<vmem>>, vector<1x128xf32>
    tpu.vector_store %arg5[%c0_41, %c0_42], %57 {strides = array<i32>} : memref<1x128xf32, #tpu.memory_space<vmem>>, vector<1x128xf32>,
    return
  }
  func.func @transform_0(%arg0: i32) -> (i32, i32) {
    %c0_i32 = arith.constant 0 : i32
    %c0_i32_0 = arith.constant 0 : i32
    return %c0_i32, %arg0 : i32, i32
  }
  func.func @transform_1(%arg0: i32) -> (i32, i32) {
    %c0_i32 = arith.constant 0 : i32
    %c0_i32_0 = arith.constant 0 : i32
    %c0_i32_1 = arith.constant 0 : i32
    return %c0_i32, %c0_i32_0 : i32, i32
  }
  func.func @transform_2(%arg0: i32) -> (i32, i32, i32) {
    %c0_i32 = arith.constant 0 : i32
    %c0_i32_0 = arith.constant 0 : i32
    %c0_i32_1 = arith.constant 0 : i32
    %c0_i32_2 = arith.constant 0 : i32
    return %c0_i32, %c0_i32_0, %c0_i32_1 : i32, i32, i32
  }
  func.func @transform_3(%arg0: i32) -> (i32, i32, i32) {
    %c0_i32 = arith.constant 0 : i32
    %c0_i32_0 = arith.constant 0 : i32
    %c0_i32_1 = arith.constant 0 : i32
    %c0_i32_2 = arith.constant 0 : i32
    return %c0_i32, %c0_i32_0, %c0_i32_1 : i32, i32, i32
  }
  func.func @transform_4(%arg0: i32) -> (i32, i32) {
    %c0_i32 = arith.constant 0 : i32
    %c0_i32_0 = arith.constant 0 : i32
    return %c0_i32, %arg0 : i32, i32
  }
}

</mosaic_0001>

<llo_original>
// kernel: tpu_custom_call.1
$region0: #{tpu_custom_call.1}
  #allocation0 [shape = 'u32[]', space=smem, size = 0x4, offset = 0x4, fixed_abs, tag = 'smem constant byte address 0x4 - core index']
  #allocation1 [shape = 'u32[144,128]{1,0:T(1,128)}', space=vmem, size = 0x12000, scoped, tag = 'internal scratch']
  %s0 = inlined_call_operand.vmem [shape: bf16[8,256], index: 0, kind: input, shape index: {}]
  %s1 = inlined_call_operand.vmem [shape: bf16[32,8], index: 1, kind: input, shape index: {}]
  %s2 = inlined_call_operand.vmem [shape: bf16[5,32,32], index: 2, kind: input, shape index: {}]
  %s3 = inlined_call_operand.vmem [shape: f32[6,32,1], index: 3, kind: input, shape index: {}]
  %s4 = inlined_call_operand.hbm [shape: f32[1,256], index: 4, kind: output, shape index: {}]
  %s5 = sld [smem:[#allocation0]]
  $region49: #{tpu_custom_call.1} parent=0
    _
  %s7 = ssub.s32 1, %s5
  %s8 = scalar_select 0, %s7, %s5
  $region1: #{tpu_custom_call.1} parent=0
    #allocation2 [shape = 'u8[1024]{0}', space=vmem, size = 0x400, scoped, tag = 'output window, operand 0']
    #allocation3 [shape = 's32[2]{0}', space=sflag, size = 0x8, scoped, tag = 'scoped memory for tpu_custom_call.1']
    %9 = vsyncpa [#allocation3], 0
    %s10 = scalar_lea.sflag [#allocation3], 1
    %11 = vsyncpa %s10, 0
    loop: start=0, step=1, limit=4
    $region2: #{tpu_custom_call.1} parent=1 // loop_pre_header
      _
    $region3: #{tpu_custom_call.1} parent=1 // loop_header
      %s13 = sphi 0, %s17
      %p14 = scmp.ge.s32.totalorder %s13, 4
      %s23 = sphi 0, %s25
      %s26 = sphi 0, %s23
      %s27 = sphi 0, %s26
      %s43 = sphi 0, %s27
      %s47 = sphi 0, %s47
      %s49 = sphi 0, %s47
      %s50 = sphi 0, %s49
      %s64 = sphi 0, %s50
      %s68 = sphi 0, %s68
      %s70 = sphi 0, %s68
      %s71 = sphi 0, %s70
      %s85 = sphi 0, %s71
      %s89 = sphi 0, %s89
      %s91 = sphi 0, %s89
      %s92 = sphi 0, %s91
      %s106 = sphi 0, %s92
      %s112 = sphi 0, %s114
      %s115 = sphi 0, %s112
      %s116 = sphi 0, %s115
      %s132 = sphi 0, %s116
    $region4: #{tpu_custom_call.1} parent=1 // loop_header_branch
      %16 = sbr.rel (%p14) target = $region8
    $region5: #{tpu_custom_call.1} parent=1 // loop_body
      %s18 = ssub.s32 %s13, 1
      %s19 = ssub.s32 %s13, 2
      %s20 = sadd.s32 %s13, 1
      %s21 = ssub.s32 %s13, %s20
      %p22 = scmp.eq.s32.totalorder %s21, 0
      %s24 = sadd.s32 %s23, 1
      %s25 = scalar_select %p22, %s23, %s24
      %p28 = pneg %p22
      %p29 = scmp.eq.s32.totalorder %s13, 1
      %p30 = por %p28, %p29
      %p31 = scmp.ne.s32.totalorder %s23, %s26
      %p32 = scmp.eq.s32.totalorder %s13, 0
      %p33 = por %p31, %p32
      %p34 = scmp.ne.s32.totalorder %s23, %s26
      %p35 = scmp.eq.s32.totalorder %s18, 1
      %p36 = por %p34, %p35
      %p37 = scmp.ne.s32.totalorder %s26, %s27
      %p38 = scmp.eq.s32.totalorder %s18, 0
      %p39 = por %p37, %p38
      %p40 = scmp.ne.s32.totalorder %s26, %s27
      %p41 = scmp.eq.s32.totalorder %s19, 1
      %p42 = por %p40, %p41
      %p44 = scmp.ne.s32.totalorder %s27, %s43
      %p45 = scmp.eq.s32.totalorder %s19, 0
      %p46 = por %p44, %p45
      %s48 = sadd.s32 %s47, 1
      %p51 = scmp.eq.s32.totalorder %s13, 1
      %p52 = scmp.ne.s32.totalorder %s47, %s49
      %p53 = scmp.eq.s32.totalorder %s13, 0
      %p54 = por %p52, %p53
      %p55 = scmp.ne.s32.totalorder %s47, %s49
      %p56 = scmp.eq.s32.totalorder %s18, 1
      %p57 = por %p55, %p56
      %p58 = scmp.ne.s32.totalorder %s49, %s50
      %p59 = scmp.eq.s32.totalorder %s18, 0
      %p60 = por %p58, %p59
      %p61 = scmp.ne.s32.totalorder %s49, %s50
      %p62 = scmp.eq.s32.totalorder %s19, 1
      %p63 = por %p61, %p62
      %p65 = scmp.ne.s32.totalorder %s50, %s64
      %p66 = scmp.eq.s32.totalorder %s19, 0
      %p67 = por %p65, %p66
      %s69 = sadd.s32 %s68, 1
      %p72 = scmp.eq.s32.totalorder %s13, 1
      %p73 = scmp.ne.s32.totalorder %s68, %s70
      %p74 = scmp.eq.s32.totalorder %s13, 0
      %p75 = por %p73, %p74
      %p76 = scmp.ne.s32.totalorder %s68, %s70
      %p77 = scmp.eq.s32.totalorder %s18, 1
      %p78 = por %p76, %p77
      %p79 = scmp.ne.s32.totalorder %s70, %s71
      %p80 = scmp.eq.s32.totalorder %s18, 0
      %p81 = por %p79, %p80
      %p82 = scmp.ne.s32.totalorder %s70, %s71
      %p83 = scmp.eq.s32.totalorder %s19, 1
      %p84 = por %p82, %p83
      %p86 = scmp.ne.s32.totalorder %s71, %s85
      %p87 = scmp.eq.s32.totalorder %s19, 0
      %p88 = por %p86, %p87
      %s90 = sadd.s32 %s89, 1
      %p93 = scmp.eq.s32.totalorder %s13, 1
      %p94 = scmp.ne.s32.totalorder %s89, %s91
      %p95 = scmp.eq.s32.totalorder %s13, 0
      %p96 = por %p94, %p95
      %p97 = scmp.ne.s32.totalorder %s89, %s91
      %p98 = scmp.eq.s32.totalorder %s18, 1
      %p99 = por %p97, %p98
      %p100 = scmp.ne.s32.totalorder %s91, %s92
      %p101 = scmp.eq.s32.totalorder %s18, 0
      %p102 = por %p100, %p101
      %p103 = scmp.ne.s32.totalorder %s91, %s92
      %p104 = scmp.eq.s32.totalorder %s19, 1
      %p105 = por %p103, %p104
      %p107 = scmp.ne.s32.totalorder %s92, %s106
      %p108 = scmp.eq.s32.totalorder %s19, 0
      %p109 = por %p107, %p108
      %s110 = ssub.s32 %s13, %s20
      %p111 = scmp.eq.s32.totalorder %s110, 0
      %s113 = sadd.s32 %s112, 1
      %s114 = scalar_select %p111, %s112, %s113
      %p117 = pneg %p111
      %p118 = scmp.eq.s32.totalorder %s13, 1
      %p119 = por %p117, %p118
      %p120 = scmp.ne.s32.totalorder %s112, %s115
      %p121 = scmp.eq.s32.totalorder %s13, 0
      %p122 = por %p120, %p121
      %p123 = scmp.ne.s32.totalorder %s112, %s115
      %p124 = scmp.eq.s32.totalorder %s18, 1
      %p125 = por %p123, %p124
      %p126 = scmp.ne.s32.totalorder %s115, %s116
      %p127 = scmp.eq.s32.totalorder %s18, 0
      %p128 = por %p126, %p127
      %p129 = scmp.ne.s32.totalorder %s115, %s116
      %p130 = scmp.eq.s32.totalorder %s19, 1
      %p131 = por %p129, %p130
      %p133 = scmp.ne.s32.totalorder %s116, %s132
      %p134 = scmp.eq.s32.totalorder %s19, 0
      %p135 = por %p133, %p134
      %p136 = scmp.le.s32.totalorder 1, %s13
      %p137 = scmp.lt.s32.totalorder %s13, 3
      %p138 = pnand %p136, %p137
      %p139 = pneg %p138
      // Predicated region
      $region9: #{tpu_custom_call.1} parent=5 // pred_check
        _
      $region10: #{tpu_custom_call.1} parent=5 // pred_check_branch
        %141 = sbr.rel (%p138) target = $region12
      $region11: #{tpu_custom_call.1} parent=5 // pred_region
        %s142 = ssub.s32 %s13, 1
        // Predicated region
        $region13: #{tpu_custom_call.1} parent=11 // pred_check
          %p143 = pneg %p60
        $region14: #{tpu_custom_call.1} parent=11 // pred_check_branch
          %145 = sbr.rel (%p143) target = $region16
        $region15: #{tpu_custom_call.1} parent=11 // pred_region
          _
        $region16: #{tpu_custom_call.1} parent=11 // pred_fallthru
          _
        // Predicated region
        $region17: #{tpu_custom_call.1} parent=11 // pred_check
          %p146 = pneg %p81
        $region18: #{tpu_custom_call.1} parent=11 // pred_check_branch
          %148 = sbr.rel (%p146) target = $region20
        $region19: #{tpu_custom_call.1} parent=11 // pred_region
          _
        $region20: #{tpu_custom_call.1} parent=11 // pred_fallthru
          _
        // Predicated region
        $region21: #{tpu_custom_call.1} parent=11 // pred_check
          %p149 = pneg %p102
        $region22: #{tpu_custom_call.1} parent=11 // pred_check_branch
          %151 = sbr.rel (%p149) target = $region24
        $region23: #{tpu_custom_call.1} parent=11 // pred_region
          _
        $region24: #{tpu_custom_call.1} parent=11 // pred_fallthru
          _
      $region12: #{tpu_custom_call.1} parent=5 // pred_fallthru
        _
      %p152 = scmp.lt.s32.totalorder %s13, 2
      // Predicated region
      $region25: #{tpu_custom_call.1} parent=5 // pred_check
        %p153 = pneg %p152
      $region26: #{tpu_custom_call.1} parent=5 // pred_check_branch
        %155 = sbr.rel (%p153) target = $region28
      $region27: #{tpu_custom_call.1} parent=5 // pred_region
        // Predicated region
        $region29: #{tpu_custom_call.1} parent=27 // pred_check
          %p156 = pneg %p33
        $region30: #{tpu_custom_call.1} parent=27 // pred_check_branch
          %158 = sbr.rel (%p156) target = $region32
        $region31: #{tpu_custom_call.1} parent=27 // pred_region
          %p159 = scmp.lt.s32.totalorder %s13, 1
          %s160 = scalar_select %p159, %s13, 1
          %s161 = smul.addr %s160, 4
          %s162 = scalar_lea.vmem %s0, %s161
        $region32: #{tpu_custom_call.1} parent=27 // pred_fallthru
          _
      $region28: #{tpu_custom_call.1} parent=5 // pred_fallthru
        _
      %p163 = scmp.le.s32.totalorder 1, %s13
      %p164 = scmp.lt.s32.totalorder %s13, 3
      %p165 = pnand %p163, %p164
      %p166 = pneg %p165
      // Predicated region
      $region33: #{tpu_custom_call.1} parent=5 // pred_check
        _
      $region34: #{tpu_custom_call.1} parent=5 // pred_check_branch
        %168 = sbr.rel (%p165) target = $region36
      $region35: #{tpu_custom_call.1} parent=5 // pred_region
        %s169 = ssub.s32 %s13, 1
        %p170 = scmp.lt.s32.totalorder %s18, 1
        %s171 = scalar_select %p170, %s18, 1
        %s172 = smul.addr %s171, 4
        %s173 = scalar_lea.vmem %s0, %s172
        %p174 = pneg %p39
        %p175 = pneg %p36
        %p176 = pneg %p60
        %p177 = pneg %p57
        %p178 = pneg %p81
        %p179 = pneg %p78
        %p180 = pneg %p102
        %p181 = pneg %p99
        %p182 = pneg %p128
        %p183 = pneg %p125
        %s184 = sand.u32 %s115, 1
        %s185 = scalar_lea.sflag [#allocation3], %s184
        %s186 = sand.u32 %s115, 1
        %s187 = scalar_lea.vmem [#allocation2], %s186
        %p188 = scmp.lt.s32.totalorder %s18, 1
        %s189 = scalar_select %p188, %s18, 1
        %s190 = smul.addr %s189, 4
        %s191 = scalar_lea.vmem %s0, %s190
        %v193 = vld [vmem:[%s1] sm:$0xf]
        %v194 = vld [vmem:[%s1 + $0x4] sm:$0xf]
        %v195 = vld [vmem:[%s1 + $0x8] sm:$0xf]
        %v196 = vld [vmem:[%s1 + $0xc] sm:$0xf]
        %v197 = vld [vmem:[%s191] sm:$0xf]
        %v198 = vld [vmem:[%s3] sm:$0xff]
        %v199 = vld [vmem:[%s3 + $0x8] sm:$0xff]
        %v200 = vld [vmem:[%s3 + $0x10] sm:$0xff]
        %v201 = vld [vmem:[%s3 + $0x18] sm:$0xff]
        %203 = vset.pattern.permute.xlu0 0
        %204 = vperm.xlu0 %203, %v198
        %v205 = vpop.permute.xlu0 %204
        %208 = vset.pattern.permute.xlu0 0
        %209 = vperm.xlu0 %208, %v199
        %v210 = vpop.permute.xlu0 %209
        %213 = vset.pattern.permute.xlu0 0
        %214 = vperm.xlu0 %213, %v200
        %v215 = vpop.permute.xlu0 %214
        %218 = vset.pattern.permute.xlu0 0
        %219 = vperm.xlu0 %218, %v201
        %v220 = vpop.permute.xlu0 %219
        %v226 = vunpack.c.l.b16 %v193
        %v227 = vunpack.c.l.b16 %v194
        %v228 = vunpack.c.l.b16 %v195
        %v229 = vunpack.c.l.b16 %v196
        %v230 = vpack.c.b16 %v227, %v226
        %v231 = vpack.c.b16 %v229, %v228
        %vm232 = vcmask 64512
        %v234 = vsel %vm232, %v230, 0
        %v237 = vsel %vm232, %v231, 0
        %vm239 = vcmask 1043456
        %v241 = vsel %vm239, %v197, 0
        %243 = vmatprep.subr.bf16.mxu0 0
        %244 = vmatpush1.bf16.msra.mxu0 %v241
        %245 = vmatprep.subr.bf16.mxu0 0
        %246 = vmatpush1.bf16.msra.mxu0 0
        %247 = vmatprep.subr.bf16.mxu0 0
        %248 = vmatpush1.bf16.msra.mxu0 0
        %249 = vmatprep.subr.bf16.mxu0 0
        %250 = vmatpush1.bf16.msra.mxu0 0
        %251 = vmatprep.subr.bf16.mxu0 0
        %252 = vmatpush1.bf16.msra.mxu0 0
        %253 = vmatprep.subr.bf16.mxu0 0
        %254 = vmatpush1.bf16.msra.mxu0 0
        %255 = vmatprep.subr.bf16.mxu0 0
        %256 = vmatpush1.bf16.msra.mxu0 0
        %257 = vmatprep.subr.bf16.mxu0 0
        %258 = vmatpush1.bf16.msra.mxu0 0
        %259 = vmatprep.subr.bf16.mxu0 0
        %260 = vmatpush1.bf16.msra.mxu0 0
        %261 = vmatprep.subr.bf16.mxu0 0
        %262 = vmatpush1.bf16.msra.mxu0 0
        %263 = vmatprep.subr.bf16.mxu0 0
        %264 = vmatpush1.bf16.msra.mxu0 0
        %265 = vmatprep.subr.bf16.mxu0 0
        %266 = vmatpush1.bf16.msra.mxu0 0
        %267 = vmatprep.subr.bf16.mxu0 0
        %268 = vmatpush1.bf16.msra.mxu0 0
        %269 = vmatprep.subr.bf16.mxu0 0
        %270 = vmatpush1.bf16.msra.mxu0 0
        %271 = vmatprep.subr.bf16.mxu0 0
        %272 = vmatpush1.bf16.msra.mxu0 0
        %273 = vmatprep.subr.bf16.mxu0 0
        %274 = vmatpush1.bf16.msra.mxu0 0
        %275 = vmatprep.mubr.bf16.mxu0 0
        %276 = vmatmul.mubr.bf16.gmra.mrb[0].mxu0 %v234
        %v277 = vpop.f32.mrb[0].mxu0
        %v278 = vadd.f32 %v205, %v277
        %v279 = vpop.f32.mrb[0].mxu0
        %v280 = vpop.f32.mrb[0].mxu0
        %v281 = vadd.f32 %v210, %v280
        %v282 = vpop.f32.mrb[0].mxu0
        %283 = vmatprep.mubr.bf16.mxu0 0
        %284 = vmatmul.mubr.bf16.gmra.mrb[0].mxu0 %v237
        %v285 = vpop.f32.mrb[0].mxu0
        %v286 = vadd.f32 %v215, %v285
        %v287 = vpop.f32.mrb[0].mxu0
        %v288 = vpop.f32.mrb[0].mxu0
        %v289 = vadd.f32 %v220, %v288
        %v290 = vpop.f32.mrb[0].mxu0
        %291 = vdwg.mxu0
        %v292 = vmax.f32 %v278, 0.0
        %v293 = vmax.f32 %v281, 0.0
        %v294 = vmax.f32 %v286, 0.0
        %v295 = vmax.f32 %v289, 0.0
        %v296 = vpack.c.bf16 %v293, %v292
        %v297 = vpack.c.bf16 %v295, %v294
        %v298 = vld [vmem:[%s2] sm:$0xf]
        %v299 = vld [vmem:[%s2 + $0x4] sm:$0xf]
        %v300 = vld [vmem:[%s2 + $0x8] sm:$0xf]
        %v301 = vld [vmem:[%s2 + $0xc] sm:$0xf]
        %s302 = scalar_lea.vmem %s3, 32
        %v303 = vld [vmem:[%s302] sm:$0xff]
        %v304 = vld [vmem:[%s302 + $0x8] sm:$0xff]
        %v305 = vld [vmem:[%s302 + $0x10] sm:$0xff]
        %v306 = vld [vmem:[%s302 + $0x18] sm:$0xff]
        %308 = vset.pattern.permute.xlu0 0
        %309 = vperm.xlu0 %308, %v303
        %v310 = vpop.permute.xlu0 %309
        %313 = vset.pattern.permute.xlu0 0
        %314 = vperm.xlu0 %313, %v304
        %v315 = vpop.permute.xlu0 %314
        %318 = vset.pattern.permute.xlu0 0
        %319 = vperm.xlu0 %318, %v305
        %v320 = vpop.permute.xlu0 %319
        %323 = vset.pattern.permute.xlu0 0
        %324 = vperm.xlu0 %323, %v306
        %v325 = vpop.permute.xlu0 %324
        %v331 = vunpack.c.l.b16 %v298
        %v332 = vunpack.c.l.b16 %v299
        %v333 = vunpack.c.l.b16 %v300
        %v334 = vunpack.c.l.b16 %v301
        %v335 = vpack.c.b16 %v332, %v331
        %v336 = vpack.c.b16 %v334, %v333
        %vm337 = vcmask 261120
        %v339 = vsel %vm337, %v335, 0
        %v342 = vsel %vm337, %v336, 0
        %344 = vmatprep.subr.bf16.mxu0 0
        %345 = vmatpush1.bf16.msra.mxu0 %v296
        %346 = vmatprep.subr.bf16.mxu0 0
        %347 = vmatpush1.bf16.msra.mxu0 %v297
        %348 = vmatprep.subr.bf16.mxu0 0
        %349 = vmatpush1.bf16.msra.mxu0 0
        %350 = vmatprep.subr.bf16.mxu0 0
        %351 = vmatpush1.bf16.msra.mxu0 0
        %352 = vmatprep.subr.bf16.mxu0 0
        %353 = vmatpush1.bf16.msra.mxu0 0
        %354 = vmatprep.subr.bf16.mxu0 0
        %355 = vmatpush1.bf16.msra.mxu0 0
        %356 = vmatprep.subr.bf16.mxu0 0
        %357 = vmatpush1.bf16.msra.mxu0 0
        %358 = vmatprep.subr.bf16.mxu0 0
        %359 = vmatpush1.bf16.msra.mxu0 0
        %360 = vmatprep.subr.bf16.mxu0 0
        %361 = vmatpush1.bf16.msra.mxu0 0
        %362 = vmatprep.subr.bf16.mxu0 0
        %363 = vmatpush1.bf16.msra.mxu0 0
        %364 = vmatprep.subr.bf16.mxu0 0
        %365 = vmatpush1.bf16.msra.mxu0 0
        %366 = vmatprep.subr.bf16.mxu0 0
        %367 = vmatpush1.bf16.msra.mxu0 0
        %368 = vmatprep.subr.bf16.mxu0 0
        %369 = vmatpush1.bf16.msra.mxu0 0
        %370 = vmatprep.subr.bf16.mxu0 0
        %371 = vmatpush1.bf16.msra.mxu0 0
        %372 = vmatprep.subr.bf16.mxu0 0
        %373 = vmatpush1.bf16.msra.mxu0 0
        %374 = vmatprep.subr.bf16.mxu0 0
        %375 = vmatpush1.bf16.msra.mxu0 0
        %376 = vmatprep.mubr.bf16.mxu0 0
        %377 = vmatmul.mubr.bf16.gmra.mrb[0].mxu0 %v339
        %v378 = vpop.f32.mrb[0].mxu0
        %v379 = vadd.f32 %v310, %v378
        %v380 = vpop.f32.mrb[0].mxu0
        %v381 = vpop.f32.mrb[0].mxu0
        %v382 = vadd.f32 %v315, %v381
        %v383 = vpop.f32.mrb[0].mxu0
        %384 = vmatprep.mubr.bf16.mxu0 0
        %385 = vmatmul.mubr.bf16.gmra.mrb[0].mxu0 %v342
        %v386 = vpop.f32.mrb[0].mxu0
        %v387 = vadd.f32 %v320, %v386
        %v388 = vpop.f32.mrb[0].mxu0
        %v389 = vpop.f32.mrb[0].mxu0
        %v390 = vadd.f32 %v325, %v389
        %v391 = vpop.f32.mrb[0].mxu0
        %392 = vdwg.mxu0
        %v393 = vmax.f32 %v379, 0.0
        %v394 = vmax.f32 %v382, 0.0
        %v395 = vmax.f32 %v387, 0.0
        %v396 = vmax.f32 %v390, 0.0
        %v397 = vpack.c.bf16 %v394, %v393
        %v398 = vpack.c.bf16 %v396, %v395
        %s399 = scalar_lea.vmem %s2, 16
        %v400 = vld [vmem:[%s399] sm:$0xf]
        %v401 = vld [vmem:[%s399 + $0x4] sm:$0xf]
        %v402 = vld [vmem:[%s399 + $0x8] sm:$0xf]
        %v403 = vld [vmem:[%s399 + $0xc] sm:$0xf]
        %s404 = scalar_lea.vmem %s3, 64
        %v405 = vld [vmem:[%s404] sm:$0xff]
        %v406 = vld [vmem:[%s404 + $0x8] sm:$0xff]
        %v407 = vld [vmem:[%s404 + $0x10] sm:$0xff]
        %v408 = vld [vmem:[%s404 + $0x18] sm:$0xff]
        %410 = vset.pattern.permute.xlu0 0
        %411 = vperm.xlu0 %410, %v405
        %v412 = vpop.permute.xlu0 %411
        %415 = vset.pattern.permute.xlu0 0
        %416 = vperm.xlu0 %415, %v406
        %v417 = vpop.permute.xlu0 %416
        %420 = vset.pattern.permute.xlu0 0
        %421 = vperm.xlu0 %420, %v407
        %v422 = vpop.permute.xlu0 %421
        %425 = vset.pattern.permute.xlu0 0
        %426 = vperm.xlu0 %425, %v408
        %v427 = vpop.permute.xlu0 %426
        %v433 = vunpack.c.l.b16 %v400
        %v434 = vunpack.c.l.b16 %v401
        %v435 = vunpack.c.l.b16 %v402
        %v436 = vunpack.c.l.b16 %v403
        %v437 = vpack.c.b16 %v434, %v433
        %v438 = vpack.c.b16 %v436, %v435
        %v440 = vsel %vm337, %v437, 0
        %v443 = vsel %vm337, %v438, 0
        %445 = vmatprep.subr.bf16.mxu0 0
        %446 = vmatpush1.bf16.msra.mxu0 %v397
        %447 = vmatprep.subr.bf16.mxu0 0
        %448 = vmatpush1.bf16.msra.mxu0 %v398
        %449 = vmatprep.subr.bf16.mxu0 0
        %450 = vmatpush1.bf16.msra.mxu0 0
        %451 = vmatprep.subr.bf16.mxu0 0
        %452 = vmatpush1.bf16.msra.mxu0 0
        %453 = vmatprep.subr.bf16.mxu0 0
        %454 = vmatpush1.bf16.msra.mxu0 0
        %455 = vmatprep.subr.bf16.mxu0 0
        %456 = vmatpush1.bf16.msra.mxu0 0
        %457 = vmatprep.subr.bf16.mxu0 0
        %458 = vmatpush1.bf16.msra.mxu0 0
        %459 = vmatprep.subr.bf16.mxu0 0
        %460 = vmatpush1.bf16.msra.mxu0 0
        %461 = vmatprep.subr.bf16.mxu0 0
        %462 = vmatpush1.bf16.msra.mxu0 0
        %463 = vmatprep.subr.bf16.mxu0 0
        %464 = vmatpush1.bf16.msra.mxu0 0
        %465 = vmatprep.subr.bf16.mxu0 0
        %466 = vmatpush1.bf16.msra.mxu0 0
        %467 = vmatprep.subr.bf16.mxu0 0
        %468 = vmatpush1.bf16.msra.mxu0 0
        %469 = vmatprep.subr.bf16.mxu0 0
        %470 = vmatpush1.bf16.msra.mxu0 0
        %471 = vmatprep.subr.bf16.mxu0 0
        %472 = vmatpush1.bf16.msra.mxu0 0
        %473 = vmatprep.subr.bf16.mxu0 0
        %474 = vmatpush1.bf16.msra.mxu0 0
        %475 = vmatprep.subr.bf16.mxu0 0
        %476 = vmatpush1.bf16.msra.mxu0 0
        %477 = vmatprep.mubr.bf16.mxu0 0
        %478 = vmatmul.mubr.bf16.gmra.mrb[0].mxu0 %v440
        %v479 = vpop.f32.mrb[0].mxu0
        %v480 = vadd.f32 %v412, %v479
        %v481 = vpop.f32.mrb[0].mxu0
        %v482 = vpop.f32.mrb[0].mxu0
        %v483 = vadd.f32 %v417, %v482
        %v484 = vpop.f32.mrb[0].mxu0
        %485 = vmatprep.mubr.bf16.mxu0 0
        %486 = vmatmul.mubr.bf16.gmra.mrb[0].mxu0 %v443
        %v487 = vpop.f32.mrb[0].mxu0
        %v488 = vadd.f32 %v422, %v487
        %v489 = vpop.f32.mrb[0].mxu0
        %v490 = vpop.f32.mrb[0].mxu0
        %v491 = vadd.f32 %v427, %v490
        %v492 = vpop.f32.mrb[0].mxu0
        %493 = vdwg.mxu0
        %v494 = vmax.f32 %v480, 0.0
        %v495 = vmax.f32 %v483, 0.0
        %v496 = vmax.f32 %v488, 0.0
        %v497 = vmax.f32 %v491, 0.0
        %v498 = vpack.c.bf16 %v495, %v494
        %v499 = vpack.c.bf16 %v497, %v496
        %s500 = scalar_lea.vmem %s2, 32
        %v501 = vld [vmem:[%s500] sm:$0xf]
        %v502 = vld [vmem:[%s500 + $0x4] sm:$0xf]
        %v503 = vld [vmem:[%s500 + $0x8] sm:$0xf]
        %v504 = vld [vmem:[%s500 + $0xc] sm:$0xf]
        %s505 = scalar_lea.vmem %s3, 96
        %v506 = vld [vmem:[%s505] sm:$0xff]
        %v507 = vld [vmem:[%s505 + $0x8] sm:$0xff]
        %v508 = vld [vmem:[%s505 + $0x10] sm:$0xff]
        %v509 = vld [vmem:[%s505 + $0x18] sm:$0xff]
        %511 = vset.pattern.permute.xlu0 0
        %512 = vperm.xlu0 %511, %v506
        %v513 = vpop.permute.xlu0 %512
        %516 = vset.pattern.permute.xlu0 0
        %517 = vperm.xlu0 %516, %v507
        %v518 = vpop.permute.xlu0 %517
        %521 = vset.pattern.permute.xlu0 0
        %522 = vperm.xlu0 %521, %v508
        %v523 = vpop.permute.xlu0 %522
        %526 = vset.pattern.permute.xlu0 0
        %527 = vperm.xlu0 %526, %v509
        %v528 = vpop.permute.xlu0 %527
        %v534 = vunpack.c.l.b16 %v501
        %v535 = vunpack.c.l.b16 %v502
        %v536 = vunpack.c.l.b16 %v503
        %v537 = vunpack.c.l.b16 %v504
        %v538 = vpack.c.b16 %v535, %v534
        %v539 = vpack.c.b16 %v537, %v536
        %v541 = vsel %vm337, %v538, 0
        %v544 = vsel %vm337, %v539, 0
        %546 = vmatprep.subr.bf16.mxu0 0
        %547 = vmatpush1.bf16.msra.mxu0 %v498
        %548 = vmatprep.subr.bf16.mxu0 0
        %549 = vmatpush1.bf16.msra.mxu0 %v499
        %550 = vmatprep.subr.bf16.mxu0 0
        %551 = vmatpush1.bf16.msra.mxu0 0
        %552 = vmatprep.subr.bf16.mxu0 0
        %553 = vmatpush1.bf16.msra.mxu0 0
        %554 = vmatprep.subr.bf16.mxu0 0
        %555 = vmatpush1.bf16.msra.mxu0 0
        %556 = vmatprep.subr.bf16.mxu0 0
        %557 = vmatpush1.bf16.msra.mxu0 0
        %558 = vmatprep.subr.bf16.mxu0 0
        %559 = vmatpush1.bf16.msra.mxu0 0
        %560 = vmatprep.subr.bf16.mxu0 0
        %561 = vmatpush1.bf16.msra.mxu0 0
        %562 = vmatprep.subr.bf16.mxu0 0
        %563 = vmatpush1.bf16.msra.mxu0 0
        %564 = vmatprep.subr.bf16.mxu0 0
        %565 = vmatpush1.bf16.msra.mxu0 0
        %566 = vmatprep.subr.bf16.mxu0 0
        %567 = vmatpush1.bf16.msra.mxu0 0
        %568 = vmatprep.subr.bf16.mxu0 0
        %569 = vmatpush1.bf16.msra.mxu0 0
        %570 = vmatprep.subr.bf16.mxu0 0
        %571 = vmatpush1.bf16.msra.mxu0 0
        %572 = vmatprep.subr.bf16.mxu0 0
        %573 = vmatpush1.bf16.msra.mxu0 0
        %574 = vmatprep.subr.bf16.mxu0 0
        %575 = vmatpush1.bf16.msra.mxu0 0
        %576 = vmatprep.subr.bf16.mxu0 0
        %577 = vmatpush1.bf16.msra.mxu0 0
        %578 = vmatprep.mubr.bf16.mxu0 0
        %579 = vmatmul.mubr.bf16.gmra.mrb[0].mxu0 %v541
        %v580 = vpop.f32.mrb[0].mxu0
        %v581 = vadd.f32 %v513, %v580
        %v582 = vpop.f32.mrb[0].mxu0
        %v583 = vpop.f32.mrb[0].mxu0
        %v584 = vadd.f32 %v518, %v583
        %v585 = vpop.f32.mrb[0].mxu0
        %586 = vmatprep.mubr.bf16.mxu0 0
        %587 = vmatmul.mubr.bf16.gmra.mrb[0].mxu0 %v544
        %v588 = vpop.f32.mrb[0].mxu0
        %v589 = vadd.f32 %v523, %v588
        %v590 = vpop.f32.mrb[0].mxu0
        %v591 = vpop.f32.mrb[0].mxu0
        %v592 = vadd.f32 %v528, %v591
        %v593 = vpop.f32.mrb[0].mxu0
        %594 = vdwg.mxu0
        %v595 = vmax.f32 %v581, 0.0
        %v596 = vmax.f32 %v584, 0.0
        %v597 = vmax.f32 %v589, 0.0
        %v598 = vmax.f32 %v592, 0.0
        %v599 = vpack.c.bf16 %v596, %v595
        %v600 = vpack.c.bf16 %v598, %v597
        %s601 = scalar_lea.vmem %s2, 48
        %v602 = vld [vmem:[%s601] sm:$0xf]
        %v603 = vld [vmem:[%s601 + $0x4] sm:$0xf]
        %v604 = vld [vmem:[%s601 + $0x8] sm:$0xf]
        %v605 = vld [vmem:[%s601 + $0xc] sm:$0xf]
        %s606 = scalar_lea.vmem %s3, 128
        %v607 = vld [vmem:[%s606] sm:$0xff]
        %v608 = vld [vmem:[%s606 + $0x8] sm:$0xff]
        %v609 = vld [vmem:[%s606 + $0x10] sm:$0xff]
        %v610 = vld [vmem:[%s606 + $0x18] sm:$0xff]
        %612 = vset.pattern.permute.xlu0 0
        %613 = vperm.xlu0 %612, %v607
        %v614 = vpop.permute.xlu0 %613
        %617 = vset.pattern.permute.xlu0 0
        %618 = vperm.xlu0 %617, %v608
        %v619 = vpop.permute.xlu0 %618
        %622 = vset.pattern.permute.xlu0 0
        %623 = vperm.xlu0 %622, %v609
        %v624 = vpop.permute.xlu0 %623
        %627 = vset.pattern.permute.xlu0 0
        %628 = vperm.xlu0 %627, %v610
        %v629 = vpop.permute.xlu0 %628
        %v635 = vunpack.c.l.b16 %v602
        %v636 = vunpack.c.l.b16 %v603
        %v637 = vunpack.c.l.b16 %v604
        %v638 = vunpack.c.l.b16 %v605
        %v639 = vpack.c.b16 %v636, %v635
        %v640 = vpack.c.b16 %v638, %v637
        %v642 = vsel %vm337, %v639, 0
        %v645 = vsel %vm337, %v640, 0
        %647 = vmatprep.subr.bf16.mxu0 0
        %648 = vmatpush1.bf16.msra.mxu0 %v599
        %649 = vmatprep.subr.bf16.mxu0 0
        %650 = vmatpush1.bf16.msra.mxu0 %v600
        %651 = vmatprep.subr.bf16.mxu0 0
        %652 = vmatpush1.bf16.msra.mxu0 0
        %653 = vmatprep.subr.bf16.mxu0 0
        %654 = vmatpush1.bf16.msra.mxu0 0
        %655 = vmatprep.subr.bf16.mxu0 0
        %656 = vmatpush1.bf16.msra.mxu0 0
        %657 = vmatprep.subr.bf16.mxu0 0
        %658 = vmatpush1.bf16.msra.mxu0 0
        %659 = vmatprep.subr.bf16.mxu0 0
        %660 = vmatpush1.bf16.msra.mxu0 0
        %661 = vmatprep.subr.bf16.mxu0 0
        %662 = vmatpush1.bf16.msra.mxu0 0
        %663 = vmatprep.subr.bf16.mxu0 0
        %664 = vmatpush1.bf16.msra.mxu0 0
        %665 = vmatprep.subr.bf16.mxu0 0
        %666 = vmatpush1.bf16.msra.mxu0 0
        %667 = vmatprep.subr.bf16.mxu0 0
        %668 = vmatpush1.bf16.msra.mxu0 0
        %669 = vmatprep.subr.bf16.mxu0 0
        %670 = vmatpush1.bf16.msra.mxu0 0
        %671 = vmatprep.subr.bf16.mxu0 0
        %672 = vmatpush1.bf16.msra.mxu0 0
        %673 = vmatprep.subr.bf16.mxu0 0
        %674 = vmatpush1.bf16.msra.mxu0 0
        %675 = vmatprep.subr.bf16.mxu0 0
        %676 = vmatpush1.bf16.msra.mxu0 0
        %677 = vmatprep.subr.bf16.mxu0 0
        %678 = vmatpush1.bf16.msra.mxu0 0
        %679 = vmatprep.mubr.bf16.mxu0 0
        %680 = vmatmul.mubr.bf16.gmra.mrb[0].mxu0 %v642
        %v681 = vpop.f32.mrb[0].mxu0
        %v682 = vadd.f32 %v614, %v681
        %v683 = vpop.f32.mrb[0].mxu0
        %v684 = vpop.f32.mrb[0].mxu0
        %v685 = vadd.f32 %v619, %v684
        %v686 = vpop.f32.mrb[0].mxu0
        %687 = vmatprep.mubr.bf16.mxu0 0
        %688 = vmatmul.mubr.bf16.gmra.mrb[0].mxu0 %v645
        %v689 = vpop.f32.mrb[0].mxu0
        %v690 = vadd.f32 %v624, %v689
        %v691 = vpop.f32.mrb[0].mxu0
        %v692 = vpop.f32.mrb[0].mxu0
        %v693 = vadd.f32 %v629, %v692
        %v694 = vpop.f32.mrb[0].mxu0
        %695 = vdwg.mxu0
        %v696 = vmax.f32 %v682, 0.0
        %v697 = vmax.f32 %v685, 0.0
        %v698 = vmax.f32 %v690, 0.0
        %v699 = vmax.f32 %v693, 0.0
        %v700 = vpack.c.bf16 %v697, %v696
        %v701 = vpack.c.bf16 %v699, %v698
        %s702 = scalar_lea.vmem %s2, 64
        %v703 = vld [vmem:[%s702] sm:$0xf]
        %v704 = vld [vmem:[%s702 + $0x4] sm:$0xf]
        %v705 = vld [vmem:[%s702 + $0x8] sm:$0xf]
        %v706 = vld [vmem:[%s702 + $0xc] sm:$0xf]
        %s707 = scalar_lea.vmem %s3, 160
        %v708 = vld [vmem:[%s707] sm:$0xff]
        %v709 = vld [vmem:[%s707 + $0x8] sm:$0xff]
        %v710 = vld [vmem:[%s707 + $0x10] sm:$0xff]
        %v711 = vld [vmem:[%s707 + $0x18] sm:$0xff]
        %713 = vset.pattern.permute.xlu0 0
        %714 = vperm.xlu0 %713, %v708
        %v715 = vpop.permute.xlu0 %714
        %718 = vset.pattern.permute.xlu0 0
        %719 = vperm.xlu0 %718, %v709
        %v720 = vpop.permute.xlu0 %719
        %722 = vset.pattern.permute.xlu0 0
        %723 = vperm.xlu0 %722, %v710
        %v724 = vpop.permute.xlu0 %723
        %726 = vset.pattern.permute.xlu0 0
        %727 = vperm.xlu0 %726, %v711
        %v728 = vpop.permute.xlu0 %727
        %v733 = vunpack.c.l.b16 %v703
        %v734 = vunpack.c.l.b16 %v704
        %v735 = vunpack.c.l.b16 %v705
        %v736 = vunpack.c.l.b16 %v706
        %v737 = vpack.c.b16 %v734, %v733
        %v738 = vpack.c.b16 %v736, %v735
        %v740 = vsel %vm337, %v737, 0
        %v743 = vsel %vm337, %v738, 0
        %745 = vmatprep.subr.bf16.mxu0 0
        %746 = vmatpush1.bf16.msra.mxu0 %v700
        %747 = vmatprep.subr.bf16.mxu0 0
        %748 = vmatpush1.bf16.msra.mxu0 %v701
        %749 = vmatprep.subr.bf16.mxu0 0
        %750 = vmatpush1.bf16.msra.mxu0 0
        %751 = vmatprep.subr.bf16.mxu0 0
        %752 = vmatpush1.bf16.msra.mxu0 0
        %753 = vmatprep.subr.bf16.mxu0 0
        %754 = vmatpush1.bf16.msra.mxu0 0
        %755 = vmatprep.subr.bf16.mxu0 0
        %756 = vmatpush1.bf16.msra.mxu0 0
        %757 = vmatprep.subr.bf16.mxu0 0
        %758 = vmatpush1.bf16.msra.mxu0 0
        %759 = vmatprep.subr.bf16.mxu0 0
        %760 = vmatpush1.bf16.msra.mxu0 0
        %761 = vmatprep.subr.bf16.mxu0 0
        %762 = vmatpush1.bf16.msra.mxu0 0
        %763 = vmatprep.subr.bf16.mxu0 0
        %764 = vmatpush1.bf16.msra.mxu0 0
        %765 = vmatprep.subr.bf16.mxu0 0
        %766 = vmatpush1.bf16.msra.mxu0 0
        %767 = vmatprep.subr.bf16.mxu0 0
        %768 = vmatpush1.bf16.msra.mxu0 0
        %769 = vmatprep.subr.bf16.mxu0 0
        %770 = vmatpush1.bf16.msra.mxu0 0
        %771 = vmatprep.subr.bf16.mxu0 0
        %772 = vmatpush1.bf16.msra.mxu0 0
        %773 = vmatprep.subr.bf16.mxu0 0
        %774 = vmatpush1.bf16.msra.mxu0 0
        %775 = vmatprep.subr.bf16.mxu0 0
        %776 = vmatpush1.bf16.msra.mxu0 0
        %777 = vmatprep.mubr.bf16.mxu0 0
        %778 = vmatmul.mubr.bf16.gmra.mrb[0].mxu0 %v740
        %v779 = vpop.f32.mrb[0].mxu0
        %v780 = vadd.f32 %v715, %v779
        %v781 = vpop.f32.mrb[0].mxu0
        %v782 = vpop.f32.mrb[0].mxu0
        %v783 = vpop.f32.mrb[0].mxu0
        %784 = vmatprep.mubr.bf16.mxu0 0
        %785 = vmatmul.mubr.bf16.gmra.mrb[0].mxu0 %v743
        %v786 = vpop.f32.mrb[0].mxu0
        %v787 = vpop.f32.mrb[0].mxu0
        %v788 = vpop.f32.mrb[0].mxu0
        %v789 = vpop.f32.mrb[0].mxu0
        %790 = vdwg.mxu0
        %791 = vst [vmem:[%s187] sm:$0x1] %v780
        %s792 = sand.u32 %s115, 1
        %s793 = scalar_lea.sflag [#allocation3], %s792
        %s794 = sand.u32 %s115, 1
        %s795 = scalar_lea.vmem [#allocation2], %s794
        // Predicated region
        $region37: #{tpu_custom_call.1} parent=35 // pred_check
          %p796 = pneg %p125
        $region38: #{tpu_custom_call.1} parent=35 // pred_check_branch
          %798 = sbr.rel (%p796) target = $region40
        $region39: #{tpu_custom_call.1} parent=35 // pred_region
          %s800 = ssub.s32 16, 16
          %801 = vsyncadd %s793, %s800
          %s802 = smul.addr %s18, 16
          %s803 = scalar_lea.hbm %s4, %s802
          %s805 = sshll.u32 %s795, 4
          %s806 = int_to_ptr.vmem [resolvable:$true] %s805
          %808 = dma.vmem_to_hbm [thread:$0]  %s806, 16, %s803, %s793
        $region40: #{tpu_custom_call.1} parent=35 // pred_fallthru
          _
      $region36: #{tpu_custom_call.1} parent=5 // pred_fallthru
        _
      %p809 = scmp.le.s32.totalorder 2, %s13
      // Predicated region
      $region41: #{tpu_custom_call.1} parent=5 // pred_check
        %p810 = pneg %p809
      $region42: #{tpu_custom_call.1} parent=5 // pred_check_branch
        %812 = sbr.rel (%p810) target = $region44
      $region43: #{tpu_custom_call.1} parent=5 // pred_region
        %s813 = ssub.s32 %s13, 2
        // Predicated region
        $region45: #{tpu_custom_call.1} parent=43 // pred_check
          %p814 = pneg %p131
        $region46: #{tpu_custom_call.1} parent=43 // pred_check_branch
          %816 = sbr.rel (%p814) target = $region48
        $region47: #{tpu_custom_call.1} parent=43 // pred_region
          %s817 = sand.u32 %s116, 1
          %s818 = scalar_lea.sflag [#allocation3], %s817
          %s819 = sand.u32 %s116, 1
          %s820 = scalar_lea.vmem [#allocation2], %s819
          %821 = dma.done %s818, 16
        $region48: #{tpu_custom_call.1} parent=43 // pred_fallthru
          _
      $region44: #{tpu_custom_call.1} parent=5 // pred_fallthru
        _
    $region6: #{tpu_custom_call.1} parent=1 // loop_footer
      %s17 = sadd.s32 1, %s13
    $region7: #{tpu_custom_call.1} parent=1 // loop_footer_branch
      %12 = sbr.rel target = $region3
    $region8: #{tpu_custom_call.1} parent=1 // loop_exit
      _
    %822 = vsyncpa [#allocation3], 1
    %s823 = scalar_lea.sflag [#allocation3], 1
    %824 = vsyncpa %s823, 1

</llo_original>
